<compile_context>
chip_gen: v7x
topology: tpu7x:2x2x1
jax: 0.10.0
libtpu: 0.0.40
codegen_flags: <defaults>
</compile_context>

<pallas_src>
import functools

import jax
import jax.numpy as jnp
from jax.experimental import pallas as pl
from jax.experimental.pallas import tpu as pltpu


def price_news_kernel(price_ref, news_ref, wih_ref, whh_ref, b_ref,
                      wn_ref, bn_ref, woh_ref, won_ref, bo_ref, out_ref,
                      *, batch_pad, seq_len, hidden_dim):
    """Whole forward pass in VMEM (single grid point).

    price_ref: (T*Bp, P) time-major flattened, batch padded to Bp (mult of 8)
    news_ref:  (Bp, N)
    wih_ref:   (P, 4H)   whh_ref: (H, 4H)   b_ref: (1, 4H)
               gate order f|i|g|o, f/i/o columns pre-scaled by 0.5, b=b_ih+b_hh
    wn_ref:    (N, H)    bn_ref:  (1, H)
    woh_ref:   (1, H)    won_ref: (1, H)    bo_ref: (1, 1)  [SMEM]
    out_ref:   (Bp, 1)
    """
    B, T, H = batch_pad, seq_len, hidden_dim

    # --- news branch + its half of the output head FIRST: independent of the
    # recurrence, so the MXU pop and the cross-lane XLU reduce hide under the
    # first LSTM steps instead of extending the epilogue.
    n = (jnp.dot(news_ref[...], wn_ref[...],
                 preferred_element_type=jnp.float32)
         + bn_ref[...])                                              # (Bp, H)
    news_term = (jnp.sum(n * won_ref[...], axis=-1, keepdims=True)
                 + bo_ref[0, 0])                                     # (Bp, 1)

    # --- hoisted input projection, pre-scaled bias folded in: one matmul for
    # all T steps.  Rows t*Bp:(t+1)*Bp are sublane-aligned (Bp % 8 == 0).
    xw = (jnp.dot(price_ref[...], wih_ref[...],
                  preferred_element_type=jnp.float32)
          + b_ref[...])                                              # (T*Bp, 4H)

    whh = whh_ref[...]                                               # (H, 4H)

    # --- recurrence: h/c stay in vregs, loop is fully unrolled (T static).
    h = jnp.zeros((B, H), jnp.float32)
    c = jnp.zeros((B, H), jnp.float32)
    for t in range(T):
        gates = xw[t * B:(t + 1) * B, :] + jnp.dot(
            h, whh, preferred_element_type=jnp.float32)              # (Bp, 4H)

        # Single EUP pass over the whole gate band.  Because the f/i/o columns
        # of the weights/bias were pre-scaled by 0.5, for those columns
        # tband = tanh(pre/2) and sigmoid(pre) = 0.5*tband + 0.5 exactly.
        tband = jnp.tanh(gates)

        f_g = 0.5 * tband[:, 0 * H:1 * H] + 0.5   # forget gate at lane offset 0
        i_g = 0.5 * tband[:, 1 * H:2 * H] + 0.5
        g_g = tband[:, 2 * H:3 * H]               # g column unscaled -> tanh(g)
        o_g = 0.5 * tband[:, 3 * H:4 * H] + 0.5

        c = f_g * c + i_g * g_g
        h = o_g * jnp.tanh(c)

    # --- output head epilogue: only the h-side lane reduction remains.
    out = jnp.sum(h * woh_ref[...], axis=-1, keepdims=True) + news_term
    out_ref[...] = out.astype(out_ref.dtype)


def pack_kernel_params(params, hidden_dim):
    """Torch-convention params -> kernel layout (f|i|g|o, 0.5-scaled f/i/o)."""
    H = hidden_dim

    def reorder_and_scale(w):  # (..., 4H) in torch i|f|g|o order
        i = w[..., 0 * H:1 * H]
        f = w[..., 1 * H:2 * H]
        g = w[..., 2 * H:3 * H]
        o = w[..., 3 * H:4 * H]
        return jnp.concatenate([0.5 * f, 0.5 * i, g, 0.5 * o], axis=-1)

    w_ih = reorder_and_scale(params["w_ih"])       # (P, 4H)
    w_hh = reorder_and_scale(params["w_hh"])       # (H, 4H)
    b_lstm = reorder_and_scale(params["b_lstm"])   # (1, 4H)
    # out.weight (1, 2H) pre-split: half on the LSTM hidden state, half on the
    # news projection (so the kernel never concatenates).
    wo_h = params["w_out"][:, :H]                  # (1, H)
    wo_n = params["w_out"][:, H:]                  # (1, H)
    return (w_ih, w_hh, b_lstm, params["w_news"], params["b_news"],
            wo_h, wo_n, params["b_out"])


def price_news_forward(price_seq, news_vec, params, *, hidden_dim):
    """price_seq: (B, T, P) batch_first (PyTorch convention); news_vec: (B, N)."""
    B, T, P = price_seq.shape
    N = news_vec.shape[1]
    B_pad = max(8, ((B + 7) // 8) * 8)             # sublane-align the batch

    # Zero-pad the batch, then time-major flatten: each step's B_pad rows of
    # the precomputed gate tensor are contiguous AND start on a sublane
    # boundary.  Padded rows never influence the real rows (pure row-parallel
    # compute) and are sliced away after the call.
    price_p = jnp.pad(price_seq.astype(jnp.float32),
                      ((0, B_pad - B), (0, 0), (0, 0)))
    news_p = jnp.pad(news_vec.astype(jnp.float32), ((0, B_pad - B), (0, 0)))
    price_2d = jnp.transpose(price_p, (1, 0, 2)).reshape(T * B_pad, P)

    kparams = pack_kernel_params(params, hidden_dim)

    kernel = functools.partial(price_news_kernel,
                               batch_pad=B_pad, seq_len=T,
                               hidden_dim=hidden_dim)

    vmem = lambda: pl.BlockSpec(memory_space=pltpu.MemorySpace.VMEM)
    smem = lambda: pl.BlockSpec(memory_space=pltpu.MemorySpace.SMEM)

    out_pad = pl.pallas_call(
        kernel,
        out_shape=jax.ShapeDtypeStruct((B_pad, 1), jnp.float32),
        in_specs=[
            vmem(),  # price (T*Bp, P)
            vmem(),  # news (Bp, N)
            vmem(),  # w_ih (P, 4H)
            vmem(),  # w_hh (H, 4H)
            vmem(),  # b_lstm (1, 4H)
            vmem(),  # w_news (N, H)
            vmem(),  # b_news (1, H)
            vmem(),  # wo_h (1, H)
            vmem(),  # wo_n (1, H)
            smem(),  # b_out (1, 1) scalar
        ],
        out_specs=vmem(),
    )(price_2d, news_p, *kparams)

    return out_pad[:B]


def make_params(key, price_dim, news_dim, hidden_dim):
    """Deterministic synthetic parameters (torch nn.LSTM / nn.Linear layout,
    stored pre-transposed for x @ W, gate order i|f|g|o, b_lstm = b_ih+b_hh)."""
    ks = jax.random.split(key, 9)
    scale = 1.0 / jnp.sqrt(jnp.float32(hidden_dim))
    u = lambda k, shape: jax.random.uniform(k, shape, jnp.float32, -scale, scale)
    w_ih = u(ks[0], (price_dim, 4 * hidden_dim))
    w_hh = u(ks[1], (hidden_dim, 4 * hidden_dim))
    b_lstm = u(ks[2], (1, 4 * hidden_dim)) + u(ks[3], (1, 4 * hidden_dim))
    w_news = u(ks[4], (news_dim, hidden_dim))
    b_news = u(ks[5], (1, hidden_dim))
    w_out = u(ks[6], (1, 2 * hidden_dim))
    b_out = u(ks[7], (1, 1))
    return dict(w_ih=w_ih, w_hh=w_hh, b_lstm=b_lstm,
                w_news=w_news, b_news=b_news,
                w_out=w_out, b_out=b_out)


def reference_forward(price_seq, news_vec, params, *, hidden_dim):
    """Pure-JAX reference mirroring torch semantics (for validation)."""
    B, T, P = price_seq.shape
    H = hidden_dim
    h = jnp.zeros((B, H), jnp.float32)
    c = jnp.zeros((B, H), jnp.float32)
    for t in range(T):
        gates = (price_seq[:, t, :] @ params["w_ih"]
                 + h @ params["w_hh"] + params["b_lstm"])
        i_g = jax.nn.sigmoid(gates[:, 0 * H:1 * H])
        f_g = jax.nn.sigmoid(gates[:, 1 * H:2 * H])
        g_g = jnp.tanh(gates[:, 2 * H:3 * H])
        o_g = jax.nn.sigmoid(gates[:, 3 * H:4 * H])
        c = f_g * c + i_g * g_g
        h = o_g * jnp.tanh(c)
    n = news_vec @ params["w_news"] + params["b_news"]
    x = jnp.concatenate([h, n], axis=1)                     # (B, 2H)
    return x @ params["w_out"].T + params["b_out"]


if __name__ == "__main__":
    B, T, PRICE_DIM, NEWS_DIM, HIDDEN = 2, 8, 4, 16, 32

    key = jax.random.PRNGKey(0)
    k_price, k_news, k_params = jax.random.split(key, 3)

    price_seq = jax.random.normal(k_price, (B, T, PRICE_DIM), jnp.float32)
    news_vec = jax.random.normal(k_news, (B, NEWS_DIM), jnp.float32)
    params = make_params(k_params, PRICE_DIM, NEWS_DIM, HIDDEN)

    out = price_news_forward(price_seq, news_vec, params, hidden_dim=HIDDEN)
    out = jax.block_until_ready(out)

    ref = reference_forward(price_seq, news_vec, params, hidden_dim=HIDDEN)
    assert out.shape == (B, 1)
    # Exact tanh-based sigmoid (no approx reciprocal) -> tight tolerance again.
    assert jnp.allclose(out, ref, atol=2e-3, rtol=2e-3), (out, ref)

    print("KERNEL_OK")
</pallas_src>

<mosaic_0001>
module attributes {stable_mosaic.version = 11 : i64} {
  func.func @price_news_kernel(%arg0: memref<64x4xf32, #tpu.memory_space<vmem>>, %arg1: memref<8x16xf32, #tpu.memory_space<vmem>>, %arg2: memref<4x128xf32, #tpu.memory_space<vmem>>, %arg3: memref<32x128xf32, #tpu.memory_space<vmem>>, %arg4: memref<1x128xf32, #tpu.memory_space<vmem>>, %arg5: memref<16x32xf32, #tpu.memory_space<vmem>>, %arg6: memref<1x32xf32, #tpu.memory_space<vmem>>, %arg7: memref<1x32xf32, #tpu.memory_space<vmem>>, %arg8: memref<1x32xf32, #tpu.memory_space<vmem>>, %arg9: memref<1x1xf32, #tpu.memory_space<smem>>, %arg10: memref<8x1xf32, #tpu.memory_space<vmem>>) attributes {dimension_semantics = [], scalar_prefetch = 0 : i64, scratch_operands = 0 : i64, tpu.core_type = #tpu.core_type<tc>} {
    %c0 = arith.constant 0 : index
    %c0_0 = arith.constant 0 : index
    %0 = vector.load %arg1[%c0, %c0_0] : memref<8x16xf32, #tpu.memory_space<vmem>>, vector<8x16xf32>
    %c0_1 = arith.constant 0 : index
    %c0_2 = arith.constant 0 : index
    %1 = vector.load %arg5[%c0_1, %c0_2] : memref<16x32xf32, #tpu.memory_space<vmem>>, vector<16x32xf32>
    %cst = arith.constant dense<0.000000e+00> : vector<8x32xf32>
    %2 = tpu.matmul %0, %1, %cst {dimension_numbers = #tpu.dot_dimension_numbers<[1], [0], [0], [1], [0, 0, 1, 1], [], []>} : vector<8x16xf32>, vector<16x32xf32>, vector<8x32xf32> -> vector<8x32xf32>
    %c0_3 = arith.constant 0 : index
    %c0_4 = arith.constant 0 : index
    %3 = vector.load %arg6[%c0_3, %c0_4] : memref<1x32xf32, #tpu.memory_space<vmem>>, vector<1x32xf32>
    %4 = vector.broadcast %3 : vector<1x32xf32> to vector<8x32xf32>
    %5 = arith.addf %2, %4 : vector<8x32xf32>
    %c0_5 = arith.constant 0 : index
    %c0_6 = arith.constant 0 : index
    %6 = vector.load %arg8[%c0_5, %c0_6] : memref<1x32xf32, #tpu.memory_space<vmem>>, vector<1x32xf32>
    %7 = vector.broadcast %6 : vector<1x32xf32> to vector<8x32xf32>
    %8 = arith.mulf %5, %7 : vector<8x32xf32>
    %cst_7 = arith.constant dense<0.000000e+00> : vector<8xf32>
    %9 = vector.multi_reduction <add>, %8, %cst_7 [1] : vector<8x32xf32> to vector<8xf32>
    %10 = vector.shape_cast %9 : vector<8xf32> to vector<8x1xf32>
    %c0_8 = arith.constant 0 : index
    %c0_9 = arith.constant 0 : index
    %11 = memref.load %arg9[%c0_8, %c0_9] : memref<1x1xf32, #tpu.memory_space<smem>>
    %12 = vector.broadcast %11 : f32 to vector<8x1xf32>
    %13 = arith.addf %10, %12 : vector<8x1xf32>
    %c0_10 = arith.constant 0 : index
    %c0_11 = arith.constant 0 : index
    %14 = vector.load %arg0[%c0_10, %c0_11] : memref<64x4xf32, #tpu.memory_space<vmem>>, vector<64x4xf32>
    %c0_12 = arith.constant 0 : index
    %c0_13 = arith.constant 0 : index
    %15 = vector.load %arg2[%c0_12, %c0_13] : memref<4x128xf32, #tpu.memory_space<vmem>>, vector<4x128xf32>
    %cst_14 = arith.constant dense<0.000000e+00> : vector<64x128xf32>
    %16 = tpu.matmul %14, %15, %cst_14 {dimension_numbers = #tpu.dot_dimension_numbers<[1], [0], [0], [1], [0, 0, 1, 1], [], []>} : vector<64x4xf32>, vector<4x128xf32>, vector<64x128xf32> -> vector<64x128xf32>
    %c0_15 = arith.constant 0 : index
    %c0_16 = arith.constant 0 : index
    %17 = vector.load %arg4[%c0_15, %c0_16] : memref<1x128xf32, #tpu.memory_space<vmem>>, vector<1x128xf32>
    %18 = vector.broadcast %17 : vector<1x128xf32> to vector<64x128xf32>
    %19 = arith.addf %16, %18 : vector<64x128xf32>
    %c0_17 = arith.constant 0 : index
    %c0_18 = arith.constant 0 : index
    %20 = vector.load %arg3[%c0_17, %c0_18] : memref<32x128xf32, #tpu.memory_space<vmem>>, vector<32x128xf32>
    %cst_19 = arith.constant 0.000000e+00 : f32
    %21 = vector.broadcast %cst_19 : f32 to vector<8x32xf32>
    %cst_20 = arith.constant 0.000000e+00 : f32
    %22 = vector.broadcast %cst_20 : f32 to vector<8x32xf32>
    %23 = vector.extract_strided_slice %19 {offsets = [0, 0], sizes = [8, 128], strides = [1, 1]} : vector<64x128xf32> to vector<8x128xf32>
    %cst_21 = arith.constant dense<0.000000e+00> : vector<8x128xf32>
    %24 = tpu.matmul %21, %20, %cst_21 {dimension_numbers = #tpu.dot_dimension_numbers<[1], [0], [0], [1], [0, 0, 1, 1], [], []>} : vector<8x32xf32>, vector<32x128xf32>, vector<8x128xf32> -> vector<8x128xf32>
    %25 = arith.addf %23, %24 : vector<8x128xf32>
    %26 = math.tanh %25 : vector<8x128xf32>
    %27 = vector.extract_strided_slice %26 {offsets = [0, 0], sizes = [8, 32], strides = [1, 1]} : vector<8x128xf32> to vector<8x32xf32>
    %cst_22 = arith.constant 5.000000e-01 : f32
    %28 = vector.broadcast %cst_22 : f32 to vector<8x32xf32>
    %29 = arith.mulf %28, %27 : vector<8x32xf32>
    %cst_23 = arith.constant 5.000000e-01 : f32
    %30 = vector.broadcast %cst_23 : f32 to vector<8x32xf32>
    %31 = arith.addf %29, %30 : vector<8x32xf32>
    %32 = vector.extract_strided_slice %26 {offsets = [0, 32], sizes = [8, 32], strides = [1, 1]} : vector<8x128xf32> to vector<8x32xf32>
    %cst_24 = arith.constant 5.000000e-01 : f32
    %33 = vector.broadcast %cst_24 : f32 to vector<8x32xf32>
    %34 = arith.mulf %33, %32 : vector<8x32xf32>
    %cst_25 = arith.constant 5.000000e-01 : f32
    %35 = vector.broadcast %cst_25 : f32 to vector<8x32xf32>
    %36 = arith.addf %34, %35 : vector<8x32xf32>
    %37 = vector.extract_strided_slice %26 {offsets = [0, 64], sizes = [8, 32], strides = [1, 1]} : vector<8x128xf32> to vector<8x32xf32>
    %38 = vector.extract_strided_slice %26 {offsets = [0, 96], sizes = [8, 32], strides = [1, 1]} : vector<8x128xf32> to vector<8x32xf32>
    %cst_26 = arith.constant 5.000000e-01 : f32
    %39 = vector.broadcast %cst_26 : f32 to vector<8x32xf32>
    %40 = arith.mulf %39, %38 : vector<8x32xf32>
    %cst_27 = arith.constant 5.000000e-01 : f32
    %41 = vector.broadcast %cst_27 : f32 to vector<8x32xf32>
    %42 = arith.addf %40, %41 : vector<8x32xf32>
    %43 = arith.mulf %31, %22 : vector<8x32xf32>
    %44 = arith.mulf %36, %37 : vector<8x32xf32>
    %45 = arith.addf %43, %44 : vector<8x32xf32>
    %46 = math.tanh %45 : vector<8x32xf32>
    %47 = arith.mulf %42, %46 : vector<8x32xf32>
    %48 = vector.extract_strided_slice %19 {offsets = [8, 0], sizes = [8, 128], strides = [1, 1]} : vector<64x128xf32> to vector<8x128xf32>
    %cst_28 = arith.constant dense<0.000000e+00> : vector<8x128xf32>
    %49 = tpu.matmul %47, %20, %cst_28 {dimension_numbers = #tpu.dot_dimension_numbers<[1], [0], [0], [1], [0, 0, 1, 1], [], []>} : vector<8x32xf32>, vector<32x128xf32>, vector<8x128xf32> -> vector<8x128xf32>
    %50 = arith.addf %48, %49 : vector<8x128xf32>
    %51 = math.tanh %50 : vector<8x128xf32>
    %52 = vector.extract_strided_slice %51 {offsets = [0, 0], sizes = [8, 32], strides = [1, 1]} : vector<8x128xf32> to vector<8x32xf32>
    %cst_29 = arith.constant 5.000000e-01 : f32
    %53 = vector.broadcast %cst_29 : f32 to vector<8x32xf32>
    %54 = arith.mulf %53, %52 : vector<8x32xf32>
    %cst_30 = arith.constant 5.000000e-01 : f32
    %55 = vector.broadcast %cst_30 : f32 to vector<8x32xf32>
    %56 = arith.addf %54, %55 : vector<8x32xf32>
    %57 = vector.extract_strided_slice %51 {offsets = [0, 32], sizes = [8, 32], strides = [1, 1]} : vector<8x128xf32> to vector<8x32xf32>
    %cst_31 = arith.constant 5.000000e-01 : f32
    %58 = vector.broadcast %cst_31 : f32 to vector<8x32xf32>
    %59 = arith.mulf %58, %57 : vector<8x32xf32>
    %cst_32 = arith.constant 5.000000e-01 : f32
    %60 = vector.broadcast %cst_32 : f32 to vector<8x32xf32>
    %61 = arith.addf %59, %60 : vector<8x32xf32>
    %62 = vector.extract_strided_slice %51 {offsets = [0, 64], sizes = [8, 32], strides = [1, 1]} : vector<8x128xf32> to vector<8x32xf32>
    %63 = vector.extract_strided_slice %51 {offsets = [0, 96], sizes = [8, 32], strides = [1, 1]} : vector<8x128xf32> to vector<8x32xf32>
    %cst_33 = arith.constant 5.000000e-01 : f32
    %64 = vector.broadcast %cst_33 : f32 to vector<8x32xf32>
    %65 = arith.mulf %64, %63 : vector<8x32xf32>
    %cst_34 = arith.constant 5.000000e-01 : f32
    %66 = vector.broadcast %cst_34 : f32 to vector<8x32xf32>
    %67 = arith.addf %65, %66 : vector<8x32xf32>
    %68 = arith.mulf %56, %45 : vector<8x32xf32>
    %69 = arith.mulf %61, %62 : vector<8x32xf32>
    %70 = arith.addf %68, %69 : vector<8x32xf32>
    %71 = math.tanh %70 : vector<8x32xf32>
    %72 = arith.mulf %67, %71 : vector<8x32xf32>
    %73 = vector.extract_strided_slice %19 {offsets = [16, 0], sizes = [8, 128], strides = [1, 1]} : vector<64x128xf32> to vector<8x128xf32>
    %cst_35 = arith.constant dense<0.000000e+00> : vector<8x128xf32>
    %74 = tpu.matmul %72, %20, %cst_35 {dimension_numbers = #tpu.dot_dimension_numbers<[1], [0], [0], [1], [0, 0, 1, 1], [], []>} : vector<8x32xf32>, vector<32x128xf32>, vector<8x128xf32> -> vector<8x128xf32>
    %75 = arith.addf %73, %74 : vector<8x128xf32>
    %76 = math.tanh %75 : vector<8x128xf32>
    %77 = vector.extract_strided_slice %76 {offsets = [0, 0], sizes = [8, 32], strides = [1, 1]} : vector<8x128xf32> to vector<8x32xf32>
    %cst_36 = arith.constant 5.000000e-01 : f32
    %78 = vector.broadcast %cst_36 : f32 to vector<8x32xf32>
    %79 = arith.mulf %78, %77 : vector<8x32xf32>
    %cst_37 = arith.constant 5.000000e-01 : f32
    %80 = vector.broadcast %cst_37 : f32 to vector<8x32xf32>
    %81 = arith.addf %79, %80 : vector<8x32xf32>
    %82 = vector.extract_strided_slice %76 {offsets = [0, 32], sizes = [8, 32], strides = [1, 1]} : vector<8x128xf32> to vector<8x32xf32>
    %cst_38 = arith.constant 5.000000e-01 : f32
    %83 = vector.broadcast %cst_38 : f32 to vector<8x32xf32>
    %84 = arith.mulf %83, %82 : vector<8x32xf32>
    %cst_39 = arith.constant 5.000000e-01 : f32
    %85 = vector.broadcast %cst_39 : f32 to vector<8x32xf32>
    %86 = arith.addf %84, %85 : vector<8x32xf32>
    %87 = vector.extract_strided_slice %76 {offsets = [0, 64], sizes = [8, 32], strides = [1, 1]} : vector<8x128xf32> to vector<8x32xf32>
    %88 = vector.extract_strided_slice %76 {offsets = [0, 96], sizes = [8, 32], strides = [1, 1]} : vector<8x128xf32> to vector<8x32xf32>
    %cst_40 = arith.constant 5.000000e-01 : f32
    %89 = vector.broadcast %cst_40 : f32 to vector<8x32xf32>
    %90 = arith.mulf %89, %88 : vector<8x32xf32>
    %cst_41 = arith.constant 5.000000e-01 : f32
    %91 = vector.broadcast %cst_41 : f32 to vector<8x32xf32>
    %92 = arith.addf %90, %91 : vector<8x32xf32>
    %93 = arith.mulf %81, %70 : vector<8x32xf32>
    %94 = arith.mulf %86, %87 : vector<8x32xf32>
    %95 = arith.addf %93, %94 : vector<8x32xf32>
    %96 = math.tanh %95 : vector<8x32xf32>
    %97 = arith.mulf %92, %96 : vector<8x32xf32>
    %98 = vector.extract_strided_slice %19 {offsets = [24, 0], sizes = [8, 128], strides = [1, 1]} : vector<64x128xf32> to vector<8x128xf32>
    %cst_42 = arith.constant dense<0.000000e+00> : vector<8x128xf32>
    %99 = tpu.matmul %97, %20, %cst_42 {dimension_numbers = #tpu.dot_dimension_numbers<[1], [0], [0], [1], [0, 0, 1, 1], [], []>} : vector<8x32xf32>, vector<32x128xf32>, vector<8x128xf32> -> vector<8x128xf32>
    %100 = arith.addf %98, %99 : vector<8x128xf32>
    %101 = math.tanh %100 : vector<8x128xf32>
    %102 = vector.extract_strided_slice %101 {offsets = [0, 0], sizes = [8, 32], strides = [1, 1]} : vector<8x128xf32> to vector<8x32xf32>
    %cst_43 = arith.constant 5.000000e-01 : f32
    %103 = vector.broadcast %cst_43 : f32 to vector<8x32xf32>
    %104 = arith.mulf %103, %102 : vector<8x32xf32>
    %cst_44 = arith.constant 5.000000e-01 : f32
    %105 = vector.broadcast %cst_44 : f32 to vector<8x32xf32>
    %106 = arith.addf %104, %105 : vector<8x32xf32>
    %107 = vector.extract_strided_slice %101 {offsets = [0, 32], sizes = [8, 32], strides = [1, 1]} : vector<8x128xf32> to vector<8x32xf32>
    %cst_45 = arith.constant 5.000000e-01 : f32
    %108 = vector.broadcast %cst_45 : f32 to vector<8x32xf32>
    %109 = arith.mulf %108, %107 : vector<8x32xf32>
    %cst_46 = arith.constant 5.000000e-01 : f32
    %110 = vector.broadcast %cst_46 : f32 to vector<8x32xf32>
    %111 = arith.addf %109, %110 : vector<8x32xf32>
    %112 = vector.extract_strided_slice %101 {offsets = [0, 64], sizes = [8, 32], strides = [1, 1]} : vector<8x128xf32> to vector<8x32xf32>
    %113 = vector.extract_strided_slice %101 {offsets = [0, 96], sizes = [8, 32], strides = [1, 1]} : vector<8x128xf32> to vector<8x32xf32>
    %cst_47 = arith.constant 5.000000e-01 : f32
    %114 = vector.broadcast %cst_47 : f32 to vector<8x32xf32>
    %115 = arith.mulf %114, %113 : vector<8x32xf32>
    %cst_48 = arith.constant 5.000000e-01 : f32
    %116 = vector.broadcast %cst_48 : f32 to vector<8x32xf32>
    %117 = arith.addf %115, %116 : vector<8x32xf32>
    %118 = arith.mulf %106, %95 : vector<8x32xf32>
    %119 = arith.mulf %111, %112 : vector<8x32xf32>
    %120 = arith.addf %118, %119 : vector<8x32xf32>
    %121 = math.tanh %120 : vector<8x32xf32>
    %122 = arith.mulf %117, %121 : vector<8x32xf32>
    %123 = vector.extract_strided_slice %19 {offsets = [32, 0], sizes = [8, 128], strides = [1, 1]} : vector<64x128xf32> to vector<8x128xf32>
    %cst_49 = arith.constant dense<0.000000e+00> : vector<8x128xf32>
    %124 = tpu.matmul %122, %20, %cst_49 {dimension_numbers = #tpu.dot_dimension_numbers<[1], [0], [0], [1], [0, 0, 1, 1], [], []>} : vector<8x32xf32>, vector<32x128xf32>, vector<8x128xf32> -> vector<8x128xf32>
    %125 = arith.addf %123, %124 : vector<8x128xf32>
    %126 = math.tanh %125 : vector<8x128xf32>
    %127 = vector.extract_strided_slice %126 {offsets = [0, 0], sizes = [8, 32], strides = [1, 1]} : vector<8x128xf32> to vector<8x32xf32>
    %cst_50 = arith.constant 5.000000e-01 : f32
    %128 = vector.broadcast %cst_50 : f32 to vector<8x32xf32>
    %129 = arith.mulf %128, %127 : vector<8x32xf32>
    %cst_51 = arith.constant 5.000000e-01 : f32
    %130 = vector.broadcast %cst_51 : f32 to vector<8x32xf32>
    %131 = arith.addf %129, %130 : vector<8x32xf32>
    %132 = vector.extract_strided_slice %126 {offsets = [0, 32], sizes = [8, 32], strides = [1, 1]} : vector<8x128xf32> to vector<8x32xf32>
    %cst_52 = arith.constant 5.000000e-01 : f32
    %133 = vector.broadcast %cst_52 : f32 to vector<8x32xf32>
    %134 = arith.mulf %133, %132 : vector<8x32xf32>
    %cst_53 = arith.constant 5.000000e-01 : f32
    %135 = vector.broadcast %cst_53 : f32 to vector<8x32xf32>
    %136 = arith.addf %134, %135 : vector<8x32xf32>
    %137 = vector.extract_strided_slice %126 {offsets = [0, 64], sizes = [8, 32], strides = [1, 1]} : vector<8x128xf32> to vector<8x32xf32>
    %138 = vector.extract_strided_slice %126 {offsets = [0, 96], sizes = [8, 32], strides = [1, 1]} : vector<8x128xf32> to vector<8x32xf32>
    %cst_54 = arith.constant 5.000000e-01 : f32
    %139 = vector.broadcast %cst_54 : f32 to vector<8x32xf32>
    %140 = arith.mulf %139, %138 : vector<8x32xf32>
    %cst_55 = arith.constant 5.000000e-01 : f32
    %141 = vector.broadcast %cst_55 : f32 to vector<8x32xf32>
    %142 = arith.addf %140, %141 : vector<8x32xf32>
    %143 = arith.mulf %131, %120 : vector<8x32xf32>
    %144 = arith.mulf %136, %137 : vector<8x32xf32>
    %145 = arith.addf %143, %144 : vector<8x32xf32>
    %146 = math.tanh %145 : vector<8x32xf32>
    %147 = arith.mulf %142, %146 : vector<8x32xf32>
    %148 = vector.extract_strided_slice %19 {offsets = [40, 0], sizes = [8, 128], strides = [1, 1]} : vector<64x128xf32> to vector<8x128xf32>
    %cst_56 = arith.constant dense<0.000000e+00> : vector<8x128xf32>
    %149 = tpu.matmul %147, %20, %cst_56 {dimension_numbers = #tpu.dot_dimension_numbers<[1], [0], [0], [1], [0, 0, 1, 1], [], []>} : vector<8x32xf32>, vector<32x128xf32>, vector<8x128xf32> -> vector<8x128xf32>
    %150 = arith.addf %148, %149 : vector<8x128xf32>
    %151 = math.tanh %150 : vector<8x128xf32>
    %152 = vector.extract_strided_slice %151 {offsets = [0, 0], sizes = [8, 32], strides = [1, 1]} : vector<8x128xf32> to vector<8x32xf32>
    %cst_57 = arith.constant 5.000000e-01 : f32
    %153 = vector.broadcast %cst_57 : f32 to vector<8x32xf32>
    %154 = arith.mulf %153, %152 : vector<8x32xf32>
    %cst_58 = arith.constant 5.000000e-01 : f32
    %155 = vector.broadcast %cst_58 : f32 to vector<8x32xf32>
    %156 = arith.addf %154, %155 : vector<8x32xf32>
    %157 = vector.extract_strided_slice %151 {offsets = [0, 32], sizes = [8, 32], strides = [1, 1]} : vector<8x128xf32> to vector<8x32xf32>
    %cst_59 = arith.constant 5.000000e-01 : f32
    %158 = vector.broadcast %cst_59 : f32 to vector<8x32xf32>
    %159 = arith.mulf %158, %157 : vector<8x32xf32>
    %cst_60 = arith.constant 5.000000e-01 : f32
    %160 = vector.broadcast %cst_60 : f32 to vector<8x32xf32>
    %161 = arith.addf %159, %160 : vector<8x32xf32>
    %162 = vector.extract_strided_slice %151 {offsets = [0, 64], sizes = [8, 32], strides = [1, 1]} : vector<8x128xf32> to vector<8x32xf32>
    %163 = vector.extract_strided_slice %151 {offsets = [0, 96], sizes = [8, 32], strides = [1, 1]} : vector<8x128xf32> to vector<8x32xf32>
    %cst_61 = arith.constant 5.000000e-01 : f32
    %164 = vector.broadcast %cst_61 : f32 to vector<8x32xf32>
    %165 = arith.mulf %164, %163 : vector<8x32xf32>
    %cst_62 = arith.constant 5.000000e-01 : f32
    %166 = vector.broadcast %cst_62 : f32 to vector<8x32xf32>
    %167 = arith.addf %165, %166 : vector<8x32xf32>
    %168 = arith.mulf %156, %145 : vector<8x32xf32>
    %169 = arith.mulf %161, %162 : vector<8x32xf32>
    %170 = arith.addf %168, %169 : vector<8x32xf32>
    %171 = math.tanh %170 : vector<8x32xf32>
    %172 = arith.mulf %167, %171 : vector<8x32xf32>
    %173 = vector.extract_strided_slice %19 {offsets = [48, 0], sizes = [8, 128], strides = [1, 1]} : vector<64x128xf32> to vector<8x128xf32>
    %cst_63 = arith.constant dense<0.000000e+00> : vector<8x128xf32>
    %174 = tpu.matmul %172, %20, %cst_63 {dimension_numbers = #tpu.dot_dimension_numbers<[1], [0], [0], [1], [0, 0, 1, 1], [], []>} : vector<8x32xf32>, vector<32x128xf32>, vector<8x128xf32> -> vector<8x128xf32>
    %175 = arith.addf %173, %174 : vector<8x128xf32>
    %176 = math.tanh %175 : vector<8x128xf32>
    %177 = vector.extract_strided_slice %176 {offsets = [0, 0], sizes = [8, 32], strides = [1, 1]} : vector<8x128xf32> to vector<8x32xf32>
    %cst_64 = arith.constant 5.000000e-01 : f32
    %178 = vector.broadcast %cst_64 : f32 to vector<8x32xf32>
    %179 = arith.mulf %178, %177 : vector<8x32xf32>
    %cst_65 = arith.constant 5.000000e-01 : f32
    %180 = vector.broadcast %cst_65 : f32 to vector<8x32xf32>
    %181 = arith.addf %179, %180 : vector<8x32xf32>
    %182 = vector.extract_strided_slice %176 {offsets = [0, 32], sizes = [8, 32], strides = [1, 1]} : vector<8x128xf32> to vector<8x32xf32>
    %cst_66 = arith.constant 5.000000e-01 : f32
    %183 = vector.broadcast %cst_66 : f32 to vector<8x32xf32>
    %184 = arith.mulf %183, %182 : vector<8x32xf32>
    %cst_67 = arith.constant 5.000000e-01 : f32
    %185 = vector.broadcast %cst_67 : f32 to vector<8x32xf32>
    %186 = arith.addf %184, %185 : vector<8x32xf32>
    %187 = vector.extract_strided_slice %176 {offsets = [0, 64], sizes = [8, 32], strides = [1, 1]} : vector<8x128xf32> to vector<8x32xf32>
    %188 = vector.extract_strided_slice %176 {offsets = [0, 96], sizes = [8, 32], strides = [1, 1]} : vector<8x128xf32> to vector<8x32xf32>
    %cst_68 = arith.constant 5.000000e-01 : f32
    %189 = vector.broadcast %cst_68 : f32 to vector<8x32xf32>
    %190 = arith.mulf %189, %188 : vector<8x32xf32>
    %cst_69 = arith.constant 5.000000e-01 : f32
    %191 = vector.broadcast %cst_69 : f32 to vector<8x32xf32>
    %192 = arith.addf %190, %191 : vector<8x32xf32>
    %193 = arith.mulf %181, %170 : vector<8x32xf32>
    %194 = arith.mulf %186, %187 : vector<8x32xf32>
    %195 = arith.addf %193, %194 : vector<8x32xf32>
    %196 = math.tanh %195 : vector<8x32xf32>
    %197 = arith.mulf %192, %196 : vector<8x32xf32>
    %198 = vector.extract_strided_slice %19 {offsets = [56, 0], sizes = [8, 128], strides = [1, 1]} : vector<64x128xf32> to vector<8x128xf32>
    %cst_70 = arith.constant dense<0.000000e+00> : vector<8x128xf32>
    %199 = tpu.matmul %197, %20, %cst_70 {dimension_numbers = #tpu.dot_dimension_numbers<[1], [0], [0], [1], [0, 0, 1, 1], [], []>} : vector<8x32xf32>, vector<32x128xf32>, vector<8x128xf32> -> vector<8x128xf32>
    %200 = arith.addf %198, %199 : vector<8x128xf32>
    %201 = math.tanh %200 : vector<8x128xf32>
    %202 = vector.extract_strided_slice %201 {offsets = [0, 0], sizes = [8, 32], strides = [1, 1]} : vector<8x128xf32> to vector<8x32xf32>
    %cst_71 = arith.constant 5.000000e-01 : f32
    %203 = vector.broadcast %cst_71 : f32 to vector<8x32xf32>
    %204 = arith.mulf %203, %202 : vector<8x32xf32>
    %cst_72 = arith.constant 5.000000e-01 : f32
    %205 = vector.broadcast %cst_72 : f32 to vector<8x32xf32>
    %206 = arith.addf %204, %205 : vector<8x32xf32>
    %207 = vector.extract_strided_slice %201 {offsets = [0, 32], sizes = [8, 32], strides = [1, 1]} : vector<8x128xf32> to vector<8x32xf32>
    %cst_73 = arith.constant 5.000000e-01 : f32
    %208 = vector.broadcast %cst_73 : f32 to vector<8x32xf32>
    %209 = arith.mulf %208, %207 : vector<8x32xf32>
    %cst_74 = arith.constant 5.000000e-01 : f32
    %210 = vector.broadcast %cst_74 : f32 to vector<8x32xf32>
    %211 = arith.addf %209, %210 : vector<8x32xf32>
    %212 = vector.extract_strided_slice %201 {offsets = [0, 64], sizes = [8, 32], strides = [1, 1]} : vector<8x128xf32> to vector<8x32xf32>
    %213 = vector.extract_strided_slice %201 {offsets = [0, 96], sizes = [8, 32], strides = [1, 1]} : vector<8x128xf32> to vector<8x32xf32>
    %cst_75 = arith.constant 5.000000e-01 : f32
    %214 = vector.broadcast %cst_75 : f32 to vector<8x32xf32>
    %215 = arith.mulf %214, %213 : vector<8x32xf32>
    %cst_76 = arith.constant 5.000000e-01 : f32
    %216 = vector.broadcast %cst_76 : f32 to vector<8x32xf32>
    %217 = arith.addf %215, %216 : vector<8x32xf32>
    %218 = arith.mulf %206, %195 : vector<8x32xf32>
    %219 = arith.mulf %211, %212 : vector<8x32xf32>
    %220 = arith.addf %218, %219 : vector<8x32xf32>
    %221 = math.tanh %220 : vector<8x32xf32>
    %222 = arith.mulf %217, %221 : vector<8x32xf32>
    %c0_77 = arith.constant 0 : index
    %c0_78 = arith.constant 0 : index
    %223 = vector.load %arg7[%c0_77, %c0_78] : memref<1x32xf32, #tpu.memory_space<vmem>>, vector<1x32xf32>
    %224 = vector.broadcast %223 : vector<1x32xf32> to vector<8x32xf32>
    %225 = arith.mulf %222, %224 : vector<8x32xf32>
    %cst_79 = arith.constant dense<0.000000e+00> : vector<8xf32>
    %226 = vector.multi_reduction <add>, %225, %cst_79 [1] : vector<8x32xf32> to vector<8xf32>
    %227 = vector.shape_cast %226 : vector<8xf32> to vector<8x1xf32>
    %228 = arith.addf %227, %13 : vector<8x1xf32>
    %c0_80 = arith.constant 0 : index
    %c0_81 = arith.constant 0 : index
    %229 = vector.load %arg10[%c0_80, %c0_81] : memref<8x1xf32, #tpu.memory_space<vmem>>, vector<8x1xf32>
    tpu.vector_store %arg10[%c0_80, %c0_81], %228 {strides = array<i32>} : memref<8x1xf32, #tpu.memory_space<vmem>>, vector<8x1xf32>,
    return
  }
}

</mosaic_0001>

<llo_original>
// kernel: tpu_custom_call.1
$region0: #{tpu_custom_call.1}
  #allocation0 [shape = 'u32[]', space=smem, size = 0x4, offset = 0x4, fixed_abs, tag = 'smem constant byte address 0x4 - core index']
  #allocation1 [shape = 'u32[144,128]{1,0:T(1,128)}', space=vmem, size = 0x12000, scoped, tag = 'internal scratch']
  #allocation2 [shape = 'f32[1,1]{1,0:T(1,128)S(6)}', space=smem, size = 0x200, scoped, tag = 'scoped memory for tpu_custom_call.1']
  %s0 = inlined_call_operand.vmem [shape: f32[64,4], index: 0, kind: input, shape index: {}]
  %s1 = inlined_call_operand.vmem [shape: f32[8,16], index: 1, kind: input, shape index: {}]
  %s2 = inlined_call_operand.vmem [shape: f32[4,128], index: 2, kind: input, shape index: {}]
  %s3 = inlined_call_operand.vmem [shape: f32[32,128], index: 3, kind: input, shape index: {}]
  %s4 = inlined_call_operand.vmem [shape: f32[1,128], index: 4, kind: input, shape index: {}]
  %s5 = inlined_call_operand.vmem [shape: f32[16,32], index: 5, kind: input, shape index: {}]
  %s6 = inlined_call_operand.vmem [shape: f32[1,32], index: 6, kind: input, shape index: {}]
  %s7 = inlined_call_operand.vmem [shape: f32[1,32], index: 7, kind: input, shape index: {}]
  %s8 = inlined_call_operand.vmem [shape: f32[1,32], index: 8, kind: input, shape index: {}]
  %s9 = inlined_call_operand.<no memory space> [shape: f32[1,1], index: 9, kind: input, shape index: {}]
  %s10 = inlined_call_operand.vmem [shape: f32[8,1], index: 10, kind: output, shape index: {}]
  %s11 = sld [smem:[#allocation0]]
  $region50: #{tpu_custom_call.1} parent=0
    _
  %s13 = ssub.s32 1, %s11
  %s14 = scalar_select 0, %s13, %s11
  %15 = sst [smem:[#allocation2]] %s9
  // Predicated region
  $region2: #{tpu_custom_call.1} parent=0 // pred_check
    _
  $region3: #{tpu_custom_call.1} parent=0 // pred_check_branch
    %17 = sbr.rel (0) target = $region5
  $region4: #{tpu_custom_call.1} parent=0 // pred_region
    _
  $region5: #{tpu_custom_call.1} parent=0 // pred_fallthru
    _
  // Predicated region
  $region6: #{tpu_custom_call.1} parent=0 // pred_check
    _
  $region7: #{tpu_custom_call.1} parent=0 // pred_check_branch
    %19 = sbr.rel (0) target = $region9
  $region8: #{tpu_custom_call.1} parent=0 // pred_region
    _
  $region9: #{tpu_custom_call.1} parent=0 // pred_fallthru
    _
  // Predicated region
  $region10: #{tpu_custom_call.1} parent=0 // pred_check
    _
  $region11: #{tpu_custom_call.1} parent=0 // pred_check_branch
    %21 = sbr.rel (0) target = $region13
  $region12: #{tpu_custom_call.1} parent=0 // pred_region
    _
  $region13: #{tpu_custom_call.1} parent=0 // pred_fallthru
    _
  // Predicated region
  $region14: #{tpu_custom_call.1} parent=0 // pred_check
    _
  $region15: #{tpu_custom_call.1} parent=0 // pred_check_branch
    %23 = sbr.rel (0) target = $region17
  $region16: #{tpu_custom_call.1} parent=0 // pred_region
    _
  $region17: #{tpu_custom_call.1} parent=0 // pred_fallthru
    _
  // Predicated region
  $region18: #{tpu_custom_call.1} parent=0 // pred_check
    _
  $region19: #{tpu_custom_call.1} parent=0 // pred_check_branch
    %25 = sbr.rel (0) target = $region21
  $region20: #{tpu_custom_call.1} parent=0 // pred_region
    _
  $region21: #{tpu_custom_call.1} parent=0 // pred_fallthru
    _
  // Predicated region
  $region22: #{tpu_custom_call.1} parent=0 // pred_check
    _
  $region23: #{tpu_custom_call.1} parent=0 // pred_check_branch
    %27 = sbr.rel (0) target = $region25
  $region24: #{tpu_custom_call.1} parent=0 // pred_region
    _
  $region25: #{tpu_custom_call.1} parent=0 // pred_fallthru
    _
  // Predicated region
  $region26: #{tpu_custom_call.1} parent=0 // pred_check
    _
  $region27: #{tpu_custom_call.1} parent=0 // pred_check_branch
    %29 = sbr.rel (0) target = $region29
  $region28: #{tpu_custom_call.1} parent=0 // pred_region
    _
  $region29: #{tpu_custom_call.1} parent=0 // pred_fallthru
    _
  // Predicated region
  $region30: #{tpu_custom_call.1} parent=0 // pred_check
    _
  $region31: #{tpu_custom_call.1} parent=0 // pred_check_branch
    %31 = sbr.rel (0) target = $region33
  $region32: #{tpu_custom_call.1} parent=0 // pred_region
    _
  $region33: #{tpu_custom_call.1} parent=0 // pred_fallthru
    _
  // Predicated region
  $region34: #{tpu_custom_call.1} parent=0 // pred_check
    _
  $region35: #{tpu_custom_call.1} parent=0 // pred_check_branch
    %33 = sbr.rel (0) target = $region37
  $region36: #{tpu_custom_call.1} parent=0 // pred_region
    _
  $region37: #{tpu_custom_call.1} parent=0 // pred_fallthru
    _
  // Predicated region
  $region38: #{tpu_custom_call.1} parent=0 // pred_check
    _
  $region39: #{tpu_custom_call.1} parent=0 // pred_check_branch
    %35 = sbr.rel (0) target = $region41
  $region40: #{tpu_custom_call.1} parent=0 // pred_region
    _
  $region41: #{tpu_custom_call.1} parent=0 // pred_fallthru
    _
  %v36 = vld [vmem:[%s1] sm:$0xff]
  %v37 = vld [vmem:[%s5] sm:$0xff]
  %v38 = vld [vmem:[%s5 + $0x8] sm:$0xff]
  %v39 = vld [vmem:[%s6] sm:$0x1]
  %v41 = vlaneseq
  %v42 = vshrl.u32 %v41, 7
  %v43 = vsub.s32 0, %v42
  %v44 = vrot.slane %v39, %v43
  %vm46 = vcmask 130048
  %v48 = vsel %vm46, %v36, 0
  %50 = vmatprep.subr.mxu0 0.0
  %51 = vmatpush1.msra.mxu0 %v37
  %52 = vmatprep.subr.mxu0 0.0
  %53 = vmatpush1.msra.mxu0 %v38
  %54 = vmatprep.subr.mxu0 0.0
  %55 = vmatpush1.msra.mxu0 0.0
  %56 = vmatprep.subr.mxu0 0.0
  %57 = vmatpush1.msra.mxu0 0.0
  %58 = vmatprep.subr.mxu0 0.0
  %59 = vmatpush1.msra.mxu0 0.0
  %60 = vmatprep.subr.mxu0 0.0
  %61 = vmatpush1.msra.mxu0 0.0
  %62 = vmatprep.subr.mxu0 0.0
  %63 = vmatpush1.msra.mxu0 0.0
  %64 = vmatprep.subr.mxu0 0.0
  %65 = vmatpush1.msra.mxu0 0.0
  %66 = vmatprep.subr.mxu0 0.0
  %67 = vmatpush1.msra.mxu0 0.0
  %68 = vmatprep.subr.mxu0 0.0
  %69 = vmatpush1.msra.mxu0 0.0
  %70 = vmatprep.subr.mxu0 0.0
  %71 = vmatpush1.msra.mxu0 0.0
  %72 = vmatprep.subr.mxu0 0.0
  %73 = vmatpush1.msra.mxu0 0.0
  %74 = vmatprep.subr.mxu0 0.0
  %75 = vmatpush1.msra.mxu0 0.0
  %76 = vmatprep.subr.mxu0 0.0
  %77 = vmatpush1.msra.mxu0 0.0
  %78 = vmatprep.subr.mxu0 0.0
  %79 = vmatpush1.msra.mxu0 0.0
  %80 = vmatprep.subr.mxu0 0.0
  %81 = vmatpush1.msra.mxu0 0.0
  %82 = vmatprep.subr.mxu0 0.0
  %83 = vmatpush1.msra.mxu0 0.0
  %84 = vmatprep.subr.mxu0 0.0
  %85 = vmatpush1.msra.mxu0 0.0
  %86 = vmatprep.subr.mxu0 0.0
  %87 = vmatpush1.msra.mxu0 0.0
  %88 = vmatprep.subr.mxu0 0.0
  %89 = vmatpush1.msra.mxu0 0.0
  %90 = vmatprep.subr.mxu0 0.0
  %91 = vmatpush1.msra.mxu0 0.0
  %92 = vmatprep.subr.mxu0 0.0
  %93 = vmatpush1.msra.mxu0 0.0
  %94 = vmatprep.subr.mxu0 0.0
  %95 = vmatpush1.msra.mxu0 0.0
  %96 = vmatprep.subr.mxu0 0.0
  %97 = vmatpush1.msra.mxu0 0.0
  %98 = vmatprep.subr.mxu0 0.0
  %99 = vmatpush1.msra.mxu0 0.0
  %100 = vmatprep.subr.mxu0 0.0
  %101 = vmatpush1.msra.mxu0 0.0
  %102 = vmatprep.subr.mxu0 0.0
  %103 = vmatpush1.msra.mxu0 0.0
  %104 = vmatprep.subr.mxu0 0.0
  %105 = vmatpush1.msra.mxu0 0.0
  %106 = vmatprep.subr.mxu0 0.0
  %107 = vmatpush1.msra.mxu0 0.0
  %108 = vmatprep.subr.mxu0 0.0
  %109 = vmatpush1.msra.mxu0 0.0
  %110 = vmatprep.subr.mxu0 0.0
  %111 = vmatpush1.msra.mxu0 0.0
  %112 = vmatprep.subr.mxu0 0.0
  %113 = vmatpush1.msra.mxu0 0.0
  %114 = vmatprep.mubr.f32.mxu0 0.0
  %115 = vmatmul.mubr.f32.gmra.mrb[0].mxu0 %v48
  %v116 = vpop.f32.mrb[0].mxu0
  %v117 = vadd.f32 %v44, %v116
  %v118 = vpop.f32.mrb[0].mxu0
  %119 = vdwg.mxu0
  %v120 = vld [vmem:[%s8] sm:$0x1]
  %v122 = vlaneseq
  %v123 = vshrl.u32 %v122, 7
  %v124 = vsub.s32 0, %v123
  %v125 = vrot.slane %v120, %v124
  %v127 = vmul.f32 %v117, %v125
  %vm128 = vcmask 261120
  %v129 = vsel %vm128, %v127, 0.0
  %130 = vadd.xlane.f32.xlu0 %v129
  %v131 = vpop.xlane.xlu0 %130
  %s132 = sld [smem:[#allocation2]]
  %v133 = vstv %s132
  %v134 = vadd.f32 %v131, %v133
  %v135 = vld [vmem:[%s0] sm:$0xff]
  %v136 = vld [vmem:[%s0 + $0x8] sm:$0xff]
  %v137 = vld [vmem:[%s0 + $0x10] sm:$0xff]
  %v138 = vld [vmem:[%s0 + $0x18] sm:$0xff]
  %v139 = vld [vmem:[%s0 + $0x20] sm:$0xff]
  %v140 = vld [vmem:[%s0 + $0x28] sm:$0xff]
  %v141 = vld [vmem:[%s0 + $0x30] sm:$0xff]
  %v142 = vld [vmem:[%s0 + $0x38] sm:$0xff]
  %v143 = vld [vmem:[%s2] sm:$0xf]
  %v144 = vld [vmem:[%s4] sm:$0x1]
  %v146 = vlaneseq
  %v147 = vshrl.u32 %v146, 7
  %v148 = vsub.s32 0, %v147
  %v149 = vrot.slane %v144, %v148
  %vm151 = vcmask 31744
  %v153 = vsel %vm151, %v135, 0
  %v156 = vsel %vm151, %v136, 0
  %v159 = vsel %vm151, %v137, 0
  %v162 = vsel %vm151, %v138, 0
  %v165 = vsel %vm151, %v139, 0
  %v168 = vsel %vm151, %v140, 0
  %v171 = vsel %vm151, %v141, 0
  %v174 = vsel %vm151, %v142, 0
  %vm176 = vcmask 1043456
  %v178 = vsel %vm176, %v143, 0
  %180 = vmatprep.subr.mxu0 0.0
  %181 = vmatpush1.msra.mxu0 %v178
  %182 = vmatprep.subr.mxu0 0.0
  %183 = vmatpush1.msra.mxu0 0.0
  %184 = vmatprep.subr.mxu0 0.0
  %185 = vmatpush1.msra.mxu0 0.0
  %186 = vmatprep.subr.mxu0 0.0
  %187 = vmatpush1.msra.mxu0 0.0
  %188 = vmatprep.subr.mxu0 0.0
  %189 = vmatpush1.msra.mxu0 0.0
  %190 = vmatprep.subr.mxu0 0.0
  %191 = vmatpush1.msra.mxu0 0.0
  %192 = vmatprep.subr.mxu0 0.0
  %193 = vmatpush1.msra.mxu0 0.0
  %194 = vmatprep.subr.mxu0 0.0
  %195 = vmatpush1.msra.mxu0 0.0
  %196 = vmatprep.subr.mxu0 0.0
  %197 = vmatpush1.msra.mxu0 0.0
  %198 = vmatprep.subr.mxu0 0.0
  %199 = vmatpush1.msra.mxu0 0.0
  %200 = vmatprep.subr.mxu0 0.0
  %201 = vmatpush1.msra.mxu0 0.0
  %202 = vmatprep.subr.mxu0 0.0
  %203 = vmatpush1.msra.mxu0 0.0
  %204 = vmatprep.subr.mxu0 0.0
  %205 = vmatpush1.msra.mxu0 0.0
  %206 = vmatprep.subr.mxu0 0.0
  %207 = vmatpush1.msra.mxu0 0.0
  %208 = vmatprep.subr.mxu0 0.0
  %209 = vmatpush1.msra.mxu0 0.0
  %210 = vmatprep.subr.mxu0 0.0
  %211 = vmatpush1.msra.mxu0 0.0
  %212 = vmatprep.subr.mxu0 0.0
  %213 = vmatpush1.msra.mxu0 0.0
  %214 = vmatprep.subr.mxu0 0.0
  %215 = vmatpush1.msra.mxu0 0.0
  %216 = vmatprep.subr.mxu0 0.0
  %217 = vmatpush1.msra.mxu0 0.0
  %218 = vmatprep.subr.mxu0 0.0
  %219 = vmatpush1.msra.mxu0 0.0
  %220 = vmatprep.subr.mxu0 0.0
  %221 = vmatpush1.msra.mxu0 0.0
  %222 = vmatprep.subr.mxu0 0.0
  %223 = vmatpush1.msra.mxu0 0.0
  %224 = vmatprep.subr.mxu0 0.0
  %225 = vmatpush1.msra.mxu0 0.0
  %226 = vmatprep.subr.mxu0 0.0
  %227 = vmatpush1.msra.mxu0 0.0
  %228 = vmatprep.subr.mxu0 0.0
  %229 = vmatpush1.msra.mxu0 0.0
  %230 = vmatprep.subr.mxu0 0.0
  %231 = vmatpush1.msra.mxu0 0.0
  %232 = vmatprep.subr.mxu0 0.0
  %233 = vmatpush1.msra.mxu0 0.0
  %234 = vmatprep.subr.mxu0 0.0
  %235 = vmatpush1.msra.mxu0 0.0
  %236 = vmatprep.subr.mxu0 0.0
  %237 = vmatpush1.msra.mxu0 0.0
  %238 = vmatprep.subr.mxu0 0.0
  %239 = vmatpush1.msra.mxu0 0.0
  %240 = vmatprep.subr.mxu0 0.0
  %241 = vmatpush1.msra.mxu0 0.0
  %242 = vmatprep.subr.mxu0 0.0
  %243 = vmatpush1.msra.mxu0 0.0
  %244 = vmatprep.mubr.f32.mxu0 0.0
  %245 = vmatmul.mubr.f32.gmra.mrb[0].mxu0 %v153
  %v246 = vpop.f32.mrb[0].mxu0
  %v247 = vadd.f32 %v149, %v246
  %v248 = vpop.f32.mrb[0].mxu0
  %249 = vmatprep.mubr.f32.mxu0 0.0
  %250 = vmatmul.mubr.f32.gmra.mrb[0].mxu0 %v156
  %v251 = vpop.f32.mrb[0].mxu0
  %v252 = vadd.f32 %v149, %v251
  %v253 = vpop.f32.mrb[0].mxu0
  %254 = vmatprep.mubr.f32.mxu0 0.0
  %255 = vmatmul.mubr.f32.gmra.mrb[0].mxu0 %v159
  %v256 = vpop.f32.mrb[0].mxu0
  %v257 = vadd.f32 %v149, %v256
  %v258 = vpop.f32.mrb[0].mxu0
  %259 = vmatprep.mubr.f32.mxu0 0.0
  %260 = vmatmul.mubr.f32.gmra.mrb[0].mxu0 %v162
  %v261 = vpop.f32.mrb[0].mxu0
  %v262 = vadd.f32 %v149, %v261
  %v263 = vpop.f32.mrb[0].mxu0
  %264 = vmatprep.mubr.f32.mxu0 0.0
  %265 = vmatmul.mubr.f32.gmra.mrb[0].mxu0 %v165
  %v266 = vpop.f32.mrb[0].mxu0
  %v267 = vadd.f32 %v149, %v266
  %v268 = vpop.f32.mrb[0].mxu0
  %269 = vmatprep.mubr.f32.mxu0 0.0
  %270 = vmatmul.mubr.f32.gmra.mrb[0].mxu0 %v168
  %v271 = vpop.f32.mrb[0].mxu0
  %v272 = vadd.f32 %v149, %v271
  %v273 = vpop.f32.mrb[0].mxu0
  %274 = vmatprep.mubr.f32.mxu0 0.0
  %275 = vmatmul.mubr.f32.gmra.mrb[0].mxu0 %v171
  %v276 = vpop.f32.mrb[0].mxu0
  %v277 = vadd.f32 %v149, %v276
  %v278 = vpop.f32.mrb[0].mxu0
  %279 = vmatprep.mubr.f32.mxu0 0.0
  %280 = vmatmul.mubr.f32.gmra.mrb[0].mxu0 %v174
  %v281 = vpop.f32.mrb[0].mxu0
  %v282 = vadd.f32 %v149, %v281
  %v283 = vpop.f32.mrb[0].mxu0
  %284 = vdwg.mxu0
  %v285 = vld [vmem:[%s3] sm:$0xff]
  %v286 = vld [vmem:[%s3 + $0x8] sm:$0xff]
  %v287 = vld [vmem:[%s3 + $0x10] sm:$0xff]
  %v288 = vld [vmem:[%s3 + $0x18] sm:$0xff]
  %v290 = vsel %vm128, 0.0, 0
  %292 = vmatprep.subr.mxu0 0.0
  %293 = vmatpush1.msra.mxu0 %v285
  %294 = vmatprep.subr.mxu0 0.0
  %295 = vmatpush1.msra.mxu0 %v286
  %296 = vmatprep.subr.mxu0 0.0
  %297 = vmatpush1.msra.mxu0 %v287
  %298 = vmatprep.subr.mxu0 0.0
  %299 = vmatpush1.msra.mxu0 %v288
  %300 = vmatprep.subr.mxu0 0.0
  %301 = vmatpush1.msra.mxu0 0.0
  %302 = vmatprep.subr.mxu0 0.0
  %303 = vmatpush1.msra.mxu0 0.0
  %304 = vmatprep.subr.mxu0 0.0
  %305 = vmatpush1.msra.mxu0 0.0
  %306 = vmatprep.subr.mxu0 0.0
  %307 = vmatpush1.msra.mxu0 0.0
  %308 = vmatprep.subr.mxu0 0.0
  %309 = vmatpush1.msra.mxu0 0.0
  %310 = vmatprep.subr.mxu0 0.0
  %311 = vmatpush1.msra.mxu0 0.0
  %312 = vmatprep.subr.mxu0 0.0
  %313 = vmatpush1.msra.mxu0 0.0
  %314 = vmatprep.subr.mxu0 0.0
  %315 = vmatpush1.msra.mxu0 0.0
  %316 = vmatprep.subr.mxu0 0.0
  %317 = vmatpush1.msra.mxu0 0.0
  %318 = vmatprep.subr.mxu0 0.0
  %319 = vmatpush1.msra.mxu0 0.0
  %320 = vmatprep.subr.mxu0 0.0
  %321 = vmatpush1.msra.mxu0 0.0
  %322 = vmatprep.subr.mxu0 0.0
  %323 = vmatpush1.msra.mxu0 0.0
  %324 = vmatprep.subr.mxu0 0.0
  %325 = vmatpush1.msra.mxu0 0.0
  %326 = vmatprep.subr.mxu0 0.0
  %327 = vmatpush1.msra.mxu0 0.0
  %328 = vmatprep.subr.mxu0 0.0
  %329 = vmatpush1.msra.mxu0 0.0
  %330 = vmatprep.subr.mxu0 0.0
  %331 = vmatpush1.msra.mxu0 0.0
  %332 = vmatprep.subr.mxu0 0.0
  %333 = vmatpush1.msra.mxu0 0.0
  %334 = vmatprep.subr.mxu0 0.0
  %335 = vmatpush1.msra.mxu0 0.0
  %336 = vmatprep.subr.mxu0 0.0
  %337 = vmatpush1.msra.mxu0 0.0
  %338 = vmatprep.subr.mxu0 0.0
  %339 = vmatpush1.msra.mxu0 0.0
  %340 = vmatprep.subr.mxu0 0.0
  %341 = vmatpush1.msra.mxu0 0.0
  %342 = vmatprep.subr.mxu0 0.0
  %343 = vmatpush1.msra.mxu0 0.0
  %344 = vmatprep.subr.mxu0 0.0
  %345 = vmatpush1.msra.mxu0 0.0
  %346 = vmatprep.subr.mxu0 0.0
  %347 = vmatpush1.msra.mxu0 0.0
  %348 = vmatprep.subr.mxu0 0.0
  %349 = vmatpush1.msra.mxu0 0.0
  %350 = vmatprep.subr.mxu0 0.0
  %351 = vmatpush1.msra.mxu0 0.0
  %352 = vmatprep.subr.mxu0 0.0
  %353 = vmatpush1.msra.mxu0 0.0
  %354 = vmatprep.subr.mxu0 0.0
  %355 = vmatpush1.msra.mxu0 0.0
  %356 = vmatprep.mubr.f32.mxu0 0.0
  %357 = vmatmul.mubr.f32.gmra.mrb[0].mxu0 %v290
  %v358 = vpop.f32.mrb[0].mxu0
  %v359 = vadd.f32 0.0, %v358
  %v360 = vpop.f32.mrb[0].mxu0
  %361 = vdwg.mxu0
  %v362 = vadd.f32 %v247, %v359
  %v363 = vtanh.pop %v362
  %v364 = vmul.f32 %v363, 0.5
  %v365 = vadd.f32 %v364, 0.5
  %v366 = vmul.f32 %v365, 0.0
  %368 = vrot.lane.b32.xlu0 %v363, 96
  %v369 = vpop.permute.xlu0 %368
  %v371 = vmul.f32 %v365, %v369
  %373 = vrot.lane.b32.xlu0 %v371, 96
  %v374 = vpop.permute.xlu0 %373
  %v376 = vadd.f32 %v366, %v374
  %v377 = vtanh.pop %v376
  %379 = vrot.lane.b32.xlu0 %v377, 96
  %v380 = vpop.permute.xlu0 %379
  %v382 = vmul.f32 %v365, %v380
  %384 = vrot.lane.b32.xlu0 %v382, 32
  %v385 = vpop.permute.xlu0 %384
  %v386 = vsel %vm128, %v385, 0
  %388 = vmatprep.subr.mxu0 0.0
  %389 = vmatpush1.msra.mxu0 %v285
  %390 = vmatprep.subr.mxu0 0.0
  %391 = vmatpush1.msra.mxu0 %v286
  %392 = vmatprep.subr.mxu0 0.0
  %393 = vmatpush1.msra.mxu0 %v287
  %394 = vmatprep.subr.mxu0 0.0
  %395 = vmatpush1.msra.mxu0 %v288
  %396 = vmatprep.subr.mxu0 0.0
  %397 = vmatpush1.msra.mxu0 0.0
  %398 = vmatprep.subr.mxu0 0.0
  %399 = vmatpush1.msra.mxu0 0.0
  %400 = vmatprep.subr.mxu0 0.0
  %401 = vmatpush1.msra.mxu0 0.0
  %402 = vmatprep.subr.mxu0 0.0
  %403 = vmatpush1.msra.mxu0 0.0
  %404 = vmatprep.subr.mxu0 0.0
  %405 = vmatpush1.msra.mxu0 0.0
  %406 = vmatprep.subr.mxu0 0.0
  %407 = vmatpush1.msra.mxu0 0.0
  %408 = vmatprep.subr.mxu0 0.0
  %409 = vmatpush1.msra.mxu0 0.0
  %410 = vmatprep.subr.mxu0 0.0
  %411 = vmatpush1.msra.mxu0 0.0
  %412 = vmatprep.subr.mxu0 0.0
  %413 = vmatpush1.msra.mxu0 0.0
  %414 = vmatprep.subr.mxu0 0.0
  %415 = vmatpush1.msra.mxu0 0.0
  %416 = vmatprep.subr.mxu0 0.0
  %417 = vmatpush1.msra.mxu0 0.0
  %418 = vmatprep.subr.mxu0 0.0
  %419 = vmatpush1.msra.mxu0 0.0
  %420 = vmatprep.subr.mxu0 0.0
  %421 = vmatpush1.msra.mxu0 0.0
  %422 = vmatprep.subr.mxu0 0.0
  %423 = vmatpush1.msra.mxu0 0.0
  %424 = vmatprep.subr.mxu0 0.0
  %425 = vmatpush1.msra.mxu0 0.0
  %426 = vmatprep.subr.mxu0 0.0
  %427 = vmatpush1.msra.mxu0 0.0
  %428 = vmatprep.subr.mxu0 0.0
  %429 = vmatpush1.msra.mxu0 0.0
  %430 = vmatprep.subr.mxu0 0.0
  %431 = vmatpush1.msra.mxu0 0.0
  %432 = vmatprep.subr.mxu0 0.0
  %433 = vmatpush1.msra.mxu0 0.0
  %434 = vmatprep.subr.mxu0 0.0
  %435 = vmatpush1.msra.mxu0 0.0
  %436 = vmatprep.subr.mxu0 0.0
  %437 = vmatpush1.msra.mxu0 0.0
  %438 = vmatprep.subr.mxu0 0.0
  %439 = vmatpush1.msra.mxu0 0.0
  %440 = vmatprep.subr.mxu0 0.0
  %441 = vmatpush1.msra.mxu0 0.0
  %442 = vmatprep.subr.mxu0 0.0
  %443 = vmatpush1.msra.mxu0 0.0
  %444 = vmatprep.subr.mxu0 0.0
  %445 = vmatpush1.msra.mxu0 0.0
  %446 = vmatprep.subr.mxu0 0.0
  %447 = vmatpush1.msra.mxu0 0.0
  %448 = vmatprep.subr.mxu0 0.0
  %449 = vmatpush1.msra.mxu0 0.0
  %450 = vmatprep.subr.mxu0 0.0
  %451 = vmatpush1.msra.mxu0 0.0
  %452 = vmatprep.mubr.f32.mxu0 0.0
  %453 = vmatmul.mubr.f32.gmra.mrb[0].mxu0 %v386
  %v454 = vpop.f32.mrb[0].mxu0
  %v455 = vadd.f32 0.0, %v454
  %v456 = vpop.f32.mrb[0].mxu0
  %457 = vdwg.mxu0
  %v458 = vadd.f32 %v252, %v455
  %v459 = vtanh.pop %v458
  %v460 = vmul.f32 %v459, 0.5
  %v461 = vadd.f32 %v460, 0.5
  %v462 = vmul.f32 %v461, %v376
  %464 = vrot.lane.b32.xlu0 %v459, 96
  %v465 = vpop.permute.xlu0 %464
  %v467 = vmul.f32 %v461, %v465
  %469 = vrot.lane.b32.xlu0 %v467, 96
  %v470 = vpop.permute.xlu0 %469
  %v472 = vadd.f32 %v462, %v470
  %v473 = vtanh.pop %v472
  %475 = vrot.lane.b32.xlu0 %v473, 96
  %v476 = vpop.permute.xlu0 %475
  %v478 = vmul.f32 %v461, %v476
  %480 = vrot.lane.b32.xlu0 %v478, 32
  %v481 = vpop.permute.xlu0 %480
  %v482 = vsel %vm128, %v481, 0
  %484 = vmatprep.subr.mxu0 0.0
  %485 = vmatpush1.msra.mxu0 %v285
  %486 = vmatprep.subr.mxu0 0.0
  %487 = vmatpush1.msra.mxu0 %v286
  %488 = vmatprep.subr.mxu0 0.0
  %489 = vmatpush1.msra.mxu0 %v287
  %490 = vmatprep.subr.mxu0 0.0
  %491 = vmatpush1.msra.mxu0 %v288
  %492 = vmatprep.subr.mxu0 0.0
  %493 = vmatpush1.msra.mxu0 0.0
  %494 = vmatprep.subr.mxu0 0.0
  %495 = vmatpush1.msra.mxu0 0.0
  %496 = vmatprep.subr.mxu0 0.0
  %497 = vmatpush1.msra.mxu0 0.0
  %498 = vmatprep.subr.mxu0 0.0
  %499 = vmatpush1.msra.mxu0 0.0
  %500 = vmatprep.subr.mxu0 0.0
  %501 = vmatpush1.msra.mxu0 0.0
  %502 = vmatprep.subr.mxu0 0.0
  %503 = vmatpush1.msra.mxu0 0.0
  %504 = vmatprep.subr.mxu0 0.0
  %505 = vmatpush1.msra.mxu0 0.0
  %506 = vmatprep.subr.mxu0 0.0
  %507 = vmatpush1.msra.mxu0 0.0
  %508 = vmatprep.subr.mxu0 0.0
  %509 = vmatpush1.msra.mxu0 0.0
  %510 = vmatprep.subr.mxu0 0.0
  %511 = vmatpush1.msra.mxu0 0.0
  %512 = vmatprep.subr.mxu0 0.0
  %513 = vmatpush1.msra.mxu0 0.0
  %514 = vmatprep.subr.mxu0 0.0
  %515 = vmatpush1.msra.mxu0 0.0
  %516 = vmatprep.subr.mxu0 0.0
  %517 = vmatpush1.msra.mxu0 0.0
  %518 = vmatprep.subr.mxu0 0.0
  %519 = vmatpush1.msra.mxu0 0.0
  %520 = vmatprep.subr.mxu0 0.0
  %521 = vmatpush1.msra.mxu0 0.0
  %522 = vmatprep.subr.mxu0 0.0
  %523 = vmatpush1.msra.mxu0 0.0
  %524 = vmatprep.subr.mxu0 0.0
  %525 = vmatpush1.msra.mxu0 0.0
  %526 = vmatprep.subr.mxu0 0.0
  %527 = vmatpush1.msra.mxu0 0.0
  %528 = vmatprep.subr.mxu0 0.0
  %529 = vmatpush1.msra.mxu0 0.0
  %530 = vmatprep.subr.mxu0 0.0
  %531 = vmatpush1.msra.mxu0 0.0
  %532 = vmatprep.subr.mxu0 0.0
  %533 = vmatpush1.msra.mxu0 0.0
  %534 = vmatprep.subr.mxu0 0.0
  %535 = vmatpush1.msra.mxu0 0.0
  %536 = vmatprep.subr.mxu0 0.0
  %537 = vmatpush1.msra.mxu0 0.0
  %538 = vmatprep.subr.mxu0 0.0
  %539 = vmatpush1.msra.mxu0 0.0
  %540 = vmatprep.subr.mxu0 0.0
  %541 = vmatpush1.msra.mxu0 0.0
  %542 = vmatprep.subr.mxu0 0.0
  %543 = vmatpush1.msra.mxu0 0.0
  %544 = vmatprep.subr.mxu0 0.0
  %545 = vmatpush1.msra.mxu0 0.0
  %546 = vmatprep.subr.mxu0 0.0
  %547 = vmatpush1.msra.mxu0 0.0
  %548 = vmatprep.mubr.f32.mxu0 0.0
  %549 = vmatmul.mubr.f32.gmra.mrb[0].mxu0 %v482
  %v550 = vpop.f32.mrb[0].mxu0
  %v551 = vadd.f32 0.0, %v550
  %v552 = vpop.f32.mrb[0].mxu0
  %553 = vdwg.mxu0
  %v554 = vadd.f32 %v257, %v551
  %v555 = vtanh.pop %v554
  %v556 = vmul.f32 %v555, 0.5
  %v557 = vadd.f32 %v556, 0.5
  %v558 = vmul.f32 %v557, %v472
  %560 = vrot.lane.b32.xlu0 %v555, 96
  %v561 = vpop.permute.xlu0 %560
  %v563 = vmul.f32 %v557, %v561
  %565 = vrot.lane.b32.xlu0 %v563, 96
  %v566 = vpop.permute.xlu0 %565
  %v568 = vadd.f32 %v558, %v566
  %v569 = vtanh.pop %v568
  %571 = vrot.lane.b32.xlu0 %v569, 96
  %v572 = vpop.permute.xlu0 %571
  %v574 = vmul.f32 %v557, %v572
  %576 = vrot.lane.b32.xlu0 %v574, 32
  %v577 = vpop.permute.xlu0 %576
  %v578 = vsel %vm128, %v577, 0
  %580 = vmatprep.subr.mxu0 0.0
  %581 = vmatpush1.msra.mxu0 %v285
  %582 = vmatprep.subr.mxu0 0.0
  %583 = vmatpush1.msra.mxu0 %v286
  %584 = vmatprep.subr.mxu0 0.0
  %585 = vmatpush1.msra.mxu0 %v287
  %586 = vmatprep.subr.mxu0 0.0
  %587 = vmatpush1.msra.mxu0 %v288
  %588 = vmatprep.subr.mxu0 0.0
  %589 = vmatpush1.msra.mxu0 0.0
  %590 = vmatprep.subr.mxu0 0.0
  %591 = vmatpush1.msra.mxu0 0.0
  %592 = vmatprep.subr.mxu0 0.0
  %593 = vmatpush1.msra.mxu0 0.0
  %594 = vmatprep.subr.mxu0 0.0
  %595 = vmatpush1.msra.mxu0 0.0
  %596 = vmatprep.subr.mxu0 0.0
  %597 = vmatpush1.msra.mxu0 0.0
  %598 = vmatprep.subr.mxu0 0.0
  %599 = vmatpush1.msra.mxu0 0.0
  %600 = vmatprep.subr.mxu0 0.0
  %601 = vmatpush1.msra.mxu0 0.0
  %602 = vmatprep.subr.mxu0 0.0
  %603 = vmatpush1.msra.mxu0 0.0
  %604 = vmatprep.subr.mxu0 0.0
  %605 = vmatpush1.msra.mxu0 0.0
  %606 = vmatprep.subr.mxu0 0.0
  %607 = vmatpush1.msra.mxu0 0.0
  %608 = vmatprep.subr.mxu0 0.0
  %609 = vmatpush1.msra.mxu0 0.0
  %610 = vmatprep.subr.mxu0 0.0
  %611 = vmatpush1.msra.mxu0 0.0
  %612 = vmatprep.subr.mxu0 0.0
  %613 = vmatpush1.msra.mxu0 0.0
  %614 = vmatprep.subr.mxu0 0.0
  %615 = vmatpush1.msra.mxu0 0.0
  %616 = vmatprep.subr.mxu0 0.0
  %617 = vmatpush1.msra.mxu0 0.0
  %618 = vmatprep.subr.mxu0 0.0
  %619 = vmatpush1.msra.mxu0 0.0
  %620 = vmatprep.subr.mxu0 0.0
  %621 = vmatpush1.msra.mxu0 0.0
  %622 = vmatprep.subr.mxu0 0.0
  %623 = vmatpush1.msra.mxu0 0.0
  %624 = vmatprep.subr.mxu0 0.0
  %625 = vmatpush1.msra.mxu0 0.0
  %626 = vmatprep.subr.mxu0 0.0
  %627 = vmatpush1.msra.mxu0 0.0
  %628 = vmatprep.subr.mxu0 0.0
  %629 = vmatpush1.msra.mxu0 0.0
  %630 = vmatprep.subr.mxu0 0.0
  %631 = vmatpush1.msra.mxu0 0.0
  %632 = vmatprep.subr.mxu0 0.0
  %633 = vmatpush1.msra.mxu0 0.0
  %634 = vmatprep.subr.mxu0 0.0
  %635 = vmatpush1.msra.mxu0 0.0
  %636 = vmatprep.subr.mxu0 0.0
  %637 = vmatpush1.msra.mxu0 0.0
  %638 = vmatprep.subr.mxu0 0.0
  %639 = vmatpush1.msra.mxu0 0.0
  %640 = vmatprep.subr.mxu0 0.0
  %641 = vmatpush1.msra.mxu0 0.0
  %642 = vmatprep.subr.mxu0 0.0
  %643 = vmatpush1.msra.mxu0 0.0
  %644 = vmatprep.mubr.f32.mxu0 0.0
  %645 = vmatmul.mubr.f32.gmra.mrb[0].mxu0 %v578
  %v646 = vpop.f32.mrb[0].mxu0
  %v647 = vadd.f32 0.0, %v646
  %v648 = vpop.f32.mrb[0].mxu0
  %649 = vdwg.mxu0
  %v650 = vadd.f32 %v262, %v647
  %v651 = vtanh.pop %v650
  %v652 = vmul.f32 %v651, 0.5
  %v653 = vadd.f32 %v652, 0.5
  %v654 = vmul.f32 %v653, %v568
  %656 = vrot.lane.b32.xlu0 %v651, 96
  %v657 = vpop.permute.xlu0 %656
  %v659 = vmul.f32 %v653, %v657
  %661 = vrot.lane.b32.xlu0 %v659, 96
  %v662 = vpop.permute.xlu0 %661
  %v664 = vadd.f32 %v654, %v662
  %v665 = vtanh.pop %v664
  %667 = vrot.lane.b32.xlu0 %v665, 96
  %v668 = vpop.permute.xlu0 %667
  %v670 = vmul.f32 %v653, %v668
  %672 = vrot.lane.b32.xlu0 %v670, 32
  %v673 = vpop.permute.xlu0 %672
  %v674 = vsel %vm128, %v673, 0
  %676 = vmatprep.subr.mxu0 0.0
  %677 = vmatpush1.msra.mxu0 %v285
  %678 = vmatprep.subr.mxu0 0.0
  %679 = vmatpush1.msra.mxu0 %v286
  %680 = vmatprep.subr.mxu0 0.0
  %681 = vmatpush1.msra.mxu0 %v287
  %682 = vmatprep.subr.mxu0 0.0
  %683 = vmatpush1.msra.mxu0 %v288
  %684 = vmatprep.subr.mxu0 0.0
  %685 = vmatpush1.msra.mxu0 0.0
  %686 = vmatprep.subr.mxu0 0.0
  %687 = vmatpush1.msra.mxu0 0.0
  %688 = vmatprep.subr.mxu0 0.0
  %689 = vmatpush1.msra.mxu0 0.0
  %690 = vmatprep.subr.mxu0 0.0
  %691 = vmatpush1.msra.mxu0 0.0
  %692 = vmatprep.subr.mxu0 0.0
  %693 = vmatpush1.msra.mxu0 0.0
  %694 = vmatprep.subr.mxu0 0.0
  %695 = vmatpush1.msra.mxu0 0.0
  %696 = vmatprep.subr.mxu0 0.0
  %697 = vmatpush1.msra.mxu0 0.0
  %698 = vmatprep.subr.mxu0 0.0
  %699 = vmatpush1.msra.mxu0 0.0
  %700 = vmatprep.subr.mxu0 0.0
  %701 = vmatpush1.msra.mxu0 0.0
  %702 = vmatprep.subr.mxu0 0.0
  %703 = vmatpush1.msra.mxu0 0.0
  %704 = vmatprep.subr.mxu0 0.0
  %705 = vmatpush1.msra.mxu0 0.0
  %706 = vmatprep.subr.mxu0 0.0
  %707 = vmatpush1.msra.mxu0 0.0
  %708 = vmatprep.subr.mxu0 0.0
  %709 = vmatpush1.msra.mxu0 0.0
  %710 = vmatprep.subr.mxu0 0.0
  %711 = vmatpush1.msra.mxu0 0.0
  %712 = vmatprep.subr.mxu0 0.0
  %713 = vmatpush1.msra.mxu0 0.0
  %714 = vmatprep.subr.mxu0 0.0
  %715 = vmatpush1.msra.mxu0 0.0
  %716 = vmatprep.subr.mxu0 0.0
  %717 = vmatpush1.msra.mxu0 0.0
  %718 = vmatprep.subr.mxu0 0.0
  %719 = vmatpush1.msra.mxu0 0.0
  %720 = vmatprep.subr.mxu0 0.0
  %721 = vmatpush1.msra.mxu0 0.0
  %722 = vmatprep.subr.mxu0 0.0
  %723 = vmatpush1.msra.mxu0 0.0
  %724 = vmatprep.subr.mxu0 0.0
  %725 = vmatpush1.msra.mxu0 0.0
  %726 = vmatprep.subr.mxu0 0.0
  %727 = vmatpush1.msra.mxu0 0.0
  %728 = vmatprep.subr.mxu0 0.0
  %729 = vmatpush1.msra.mxu0 0.0
  %730 = vmatprep.subr.mxu0 0.0
  %731 = vmatpush1.msra.mxu0 0.0
  %732 = vmatprep.subr.mxu0 0.0
  %733 = vmatpush1.msra.mxu0 0.0
  %734 = vmatprep.subr.mxu0 0.0
  %735 = vmatpush1.msra.mxu0 0.0
  %736 = vmatprep.subr.mxu0 0.0
  %737 = vmatpush1.msra.mxu0 0.0
  %738 = vmatprep.subr.mxu0 0.0
  %739 = vmatpush1.msra.mxu0 0.0
  %740 = vmatprep.mubr.f32.mxu0 0.0
  %741 = vmatmul.mubr.f32.gmra.mrb[0].mxu0 %v674
  %v742 = vpop.f32.mrb[0].mxu0
  %v743 = vadd.f32 0.0, %v742
  %v744 = vpop.f32.mrb[0].mxu0
  %745 = vdwg.mxu0
  %v746 = vadd.f32 %v267, %v743
  %v747 = vtanh.pop %v746
  %v748 = vmul.f32 %v747, 0.5
  %v749 = vadd.f32 %v748, 0.5
  %v750 = vmul.f32 %v749, %v664
  %752 = vrot.lane.b32.xlu0 %v747, 96
  %v753 = vpop.permute.xlu0 %752
  %v755 = vmul.f32 %v749, %v753
  %757 = vrot.lane.b32.xlu0 %v755, 96
  %v758 = vpop.permute.xlu0 %757
  %v760 = vadd.f32 %v750, %v758
  %v761 = vtanh.pop %v760
  %763 = vrot.lane.b32.xlu0 %v761, 96
  %v764 = vpop.permute.xlu0 %763
  %v766 = vmul.f32 %v749, %v764
  %768 = vrot.lane.b32.xlu0 %v766, 32
  %v769 = vpop.permute.xlu0 %768
  %v770 = vsel %vm128, %v769, 0
  %772 = vmatprep.subr.mxu0 0.0
  %773 = vmatpush1.msra.mxu0 %v285
  %774 = vmatprep.subr.mxu0 0.0
  %775 = vmatpush1.msra.mxu0 %v286
  %776 = vmatprep.subr.mxu0 0.0
  %777 = vmatpush1.msra.mxu0 %v287
  %778 = vmatprep.subr.mxu0 0.0
  %779 = vmatpush1.msra.mxu0 %v288
  %780 = vmatprep.subr.mxu0 0.0
  %781 = vmatpush1.msra.mxu0 0.0
  %782 = vmatprep.subr.mxu0 0.0
  %783 = vmatpush1.msra.mxu0 0.0
  %784 = vmatprep.subr.mxu0 0.0
  %785 = vmatpush1.msra.mxu0 0.0
  %786 = vmatprep.subr.mxu0 0.0
  %787 = vmatpush1.msra.mxu0 0.0
  %788 = vmatprep.subr.mxu0 0.0
  %789 = vmatpush1.msra.mxu0 0.0
  %790 = vmatprep.subr.mxu0 0.0
  %791 = vmatpush1.msra.mxu0 0.0
  %792 = vmatprep.subr.mxu0 0.0
  %793 = vmatpush1.msra.mxu0 0.0
  %794 = vmatprep.subr.mxu0 0.0
  %795 = vmatpush1.msra.mxu0 0.0
  %796 = vmatprep.subr.mxu0 0.0
  %797 = vmatpush1.msra.mxu0 0.0
  %798 = vmatprep.subr.mxu0 0.0
  %799 = vmatpush1.msra.mxu0 0.0
  %800 = vmatprep.subr.mxu0 0.0
  %801 = vmatpush1.msra.mxu0 0.0
  %802 = vmatprep.subr.mxu0 0.0
  %803 = vmatpush1.msra.mxu0 0.0
  %804 = vmatprep.subr.mxu0 0.0
  %805 = vmatpush1.msra.mxu0 0.0
  %806 = vmatprep.subr.mxu0 0.0
  %807 = vmatpush1.msra.mxu0 0.0
  %808 = vmatprep.subr.mxu0 0.0
  %809 = vmatpush1.msra.mxu0 0.0
  %810 = vmatprep.subr.mxu0 0.0
  %811 = vmatpush1.msra.mxu0 0.0
  %812 = vmatprep.subr.mxu0 0.0
  %813 = vmatpush1.msra.mxu0 0.0
  %814 = vmatprep.subr.mxu0 0.0
  %815 = vmatpush1.msra.mxu0 0.0
  %816 = vmatprep.subr.mxu0 0.0
  %817 = vmatpush1.msra.mxu0 0.0
  %818 = vmatprep.subr.mxu0 0.0
  %819 = vmatpush1.msra.mxu0 0.0
  %820 = vmatprep.subr.mxu0 0.0
  %821 = vmatpush1.msra.mxu0 0.0
  %822 = vmatprep.subr.mxu0 0.0
  %823 = vmatpush1.msra.mxu0 0.0
  %824 = vmatprep.subr.mxu0 0.0
  %825 = vmatpush1.msra.mxu0 0.0
  %826 = vmatprep.subr.mxu0 0.0
  %827 = vmatpush1.msra.mxu0 0.0
  %828 = vmatprep.subr.mxu0 0.0
  %829 = vmatpush1.msra.mxu0 0.0
  %830 = vmatprep.subr.mxu0 0.0
  %831 = vmatpush1.msra.mxu0 0.0
  %832 = vmatprep.subr.mxu0 0.0
  %833 = vmatpush1.msra.mxu0 0.0
  %834 = vmatprep.subr.mxu0 0.0
  %835 = vmatpush1.msra.mxu0 0.0
  %836 = vmatprep.mubr.f32.mxu0 0.0
  %837 = vmatmul.mubr.f32.gmra.mrb[0].mxu0 %v770
  %v838 = vpop.f32.mrb[0].mxu0
  %v839 = vadd.f32 0.0, %v838
  %v840 = vpop.f32.mrb[0].mxu0
  %841 = vdwg.mxu0
  %v842 = vadd.f32 %v272, %v839
  %v843 = vtanh.pop %v842
  %v844 = vmul.f32 %v843, 0.5
  %v845 = vadd.f32 %v844, 0.5
  %v846 = vmul.f32 %v845, %v760
  %848 = vrot.lane.b32.xlu0 %v843, 96
  %v849 = vpop.permute.xlu0 %848
  %v851 = vmul.f32 %v845, %v849
  %853 = vrot.lane.b32.xlu0 %v851, 96
  %v854 = vpop.permute.xlu0 %853
  %v856 = vadd.f32 %v846, %v854
  %v857 = vtanh.pop %v856
  %859 = vrot.lane.b32.xlu0 %v857, 96
  %v860 = vpop.permute.xlu0 %859
  %v862 = vmul.f32 %v845, %v860
  %864 = vrot.lane.b32.xlu0 %v862, 32
  %v865 = vpop.permute.xlu0 %864
  %v866 = vsel %vm128, %v865, 0
  %868 = vmatprep.subr.mxu0 0.0
  %869 = vmatpush1.msra.mxu0 %v285
  %870 = vmatprep.subr.mxu0 0.0
  %871 = vmatpush1.msra.mxu0 %v286
  %872 = vmatprep.subr.mxu0 0.0
  %873 = vmatpush1.msra.mxu0 %v287
  %874 = vmatprep.subr.mxu0 0.0
  %875 = vmatpush1.msra.mxu0 %v288
  %876 = vmatprep.subr.mxu0 0.0
  %877 = vmatpush1.msra.mxu0 0.0
  %878 = vmatprep.subr.mxu0 0.0
  %879 = vmatpush1.msra.mxu0 0.0
  %880 = vmatprep.subr.mxu0 0.0
  %881 = vmatpush1.msra.mxu0 0.0
  %882 = vmatprep.subr.mxu0 0.0
  %883 = vmatpush1.msra.mxu0 0.0
  %884 = vmatprep.subr.mxu0 0.0
  %885 = vmatpush1.msra.mxu0 0.0
  %886 = vmatprep.subr.mxu0 0.0
  %887 = vmatpush1.msra.mxu0 0.0
  %888 = vmatprep.subr.mxu0 0.0
  %889 = vmatpush1.msra.mxu0 0.0
  %890 = vmatprep.subr.mxu0 0.0
  %891 = vmatpush1.msra.mxu0 0.0
  %892 = vmatprep.subr.mxu0 0.0
  %893 = vmatpush1.msra.mxu0 0.0
  %894 = vmatprep.subr.mxu0 0.0
  %895 = vmatpush1.msra.mxu0 0.0
  %896 = vmatprep.subr.mxu0 0.0
  %897 = vmatpush1.msra.mxu0 0.0
  %898 = vmatprep.subr.mxu0 0.0
  %899 = vmatpush1.msra.mxu0 0.0
  %900 = vmatprep.subr.mxu0 0.0
  %901 = vmatpush1.msra.mxu0 0.0
  %902 = vmatprep.subr.mxu0 0.0
  %903 = vmatpush1.msra.mxu0 0.0
  %904 = vmatprep.subr.mxu0 0.0
  %905 = vmatpush1.msra.mxu0 0.0
  %906 = vmatprep.subr.mxu0 0.0
  %907 = vmatpush1.msra.mxu0 0.0
  %908 = vmatprep.subr.mxu0 0.0
  %909 = vmatpush1.msra.mxu0 0.0
  %910 = vmatprep.subr.mxu0 0.0
  %911 = vmatpush1.msra.mxu0 0.0
  %912 = vmatprep.subr.mxu0 0.0
  %913 = vmatpush1.msra.mxu0 0.0
  %914 = vmatprep.subr.mxu0 0.0
  %915 = vmatpush1.msra.mxu0 0.0
  %916 = vmatprep.subr.mxu0 0.0
  %917 = vmatpush1.msra.mxu0 0.0
  %918 = vmatprep.subr.mxu0 0.0
  %919 = vmatpush1.msra.mxu0 0.0
  %920 = vmatprep.subr.mxu0 0.0
  %921 = vmatpush1.msra.mxu0 0.0
  %922 = vmatprep.subr.mxu0 0.0
  %923 = vmatpush1.msra.mxu0 0.0
  %924 = vmatprep.subr.mxu0 0.0
  %925 = vmatpush1.msra.mxu0 0.0
  %926 = vmatprep.subr.mxu0 0.0
  %927 = vmatpush1.msra.mxu0 0.0
  %928 = vmatprep.subr.mxu0 0.0
  %929 = vmatpush1.msra.mxu0 0.0
  %930 = vmatprep.subr.mxu0 0.0
  %931 = vmatpush1.msra.mxu0 0.0
  %932 = vmatprep.mubr.f32.mxu0 0.0
  %933 = vmatmul.mubr.f32.gmra.mrb[0].mxu0 %v866
  %v934 = vpop.f32.mrb[0].mxu0
  %v935 = vadd.f32 0.0, %v934
  %v936 = vpop.f32.mrb[0].mxu0
  %937 = vdwg.mxu0
  %v938 = vadd.f32 %v277, %v935
  %v939 = vtanh.pop %v938
  %v940 = vmul.f32 %v939, 0.5
  %v941 = vadd.f32 %v940, 0.5
  %v942 = vmul.f32 %v941, %v856
  %944 = vrot.lane.b32.xlu0 %v939, 96
  %v945 = vpop.permute.xlu0 %944
  %v947 = vmul.f32 %v941, %v945
  %949 = vrot.lane.b32.xlu0 %v947, 96
  %v950 = vpop.permute.xlu0 %949
  %v952 = vadd.f32 %v942, %v950
  %v953 = vtanh.pop %v952
  %955 = vrot.lane.b32.xlu0 %v953, 96
  %v956 = vpop.permute.xlu0 %955
  %v958 = vmul.f32 %v941, %v956
  %960 = vrot.lane.b32.xlu0 %v958, 32
  %v961 = vpop.permute.xlu0 %960
  %v962 = vsel %vm128, %v961, 0
  %964 = vmatprep.subr.mxu0 0.0
  %965 = vmatpush1.msra.mxu0 %v285
  %966 = vmatprep.subr.mxu0 0.0
  %967 = vmatpush1.msra.mxu0 %v286
  %968 = vmatprep.subr.mxu0 0.0
  %969 = vmatpush1.msra.mxu0 %v287
  %970 = vmatprep.subr.mxu0 0.0
  %971 = vmatpush1.msra.mxu0 %v288
  %972 = vmatprep.subr.mxu0 0.0
  %973 = vmatpush1.msra.mxu0 0.0
  %974 = vmatprep.subr.mxu0 0.0
  %975 = vmatpush1.msra.mxu0 0.0
  %976 = vmatprep.subr.mxu0 0.0
  %977 = vmatpush1.msra.mxu0 0.0
  %978 = vmatprep.subr.mxu0 0.0
  %979 = vmatpush1.msra.mxu0 0.0
  %980 = vmatprep.subr.mxu0 0.0
  %981 = vmatpush1.msra.mxu0 0.0
  %982 = vmatprep.subr.mxu0 0.0
  %983 = vmatpush1.msra.mxu0 0.0
  %984 = vmatprep.subr.mxu0 0.0
  %985 = vmatpush1.msra.mxu0 0.0
  %986 = vmatprep.subr.mxu0 0.0
  %987 = vmatpush1.msra.mxu0 0.0
  %988 = vmatprep.subr.mxu0 0.0
  %989 = vmatpush1.msra.mxu0 0.0
  %990 = vmatprep.subr.mxu0 0.0
  %991 = vmatpush1.msra.mxu0 0.0
  %992 = vmatprep.subr.mxu0 0.0
  %993 = vmatpush1.msra.mxu0 0.0
  %994 = vmatprep.subr.mxu0 0.0
  %995 = vmatpush1.msra.mxu0 0.0
  %996 = vmatprep.subr.mxu0 0.0
  %997 = vmatpush1.msra.mxu0 0.0
  %998 = vmatprep.subr.mxu0 0.0
  %999 = vmatpush1.msra.mxu0 0.0
  %1000 = vmatprep.subr.mxu0 0.0
  %1001 = vmatpush1.msra.mxu0 0.0
  %1002 = vmatprep.subr.mxu0 0.0
  %1003 = vmatpush1.msra.mxu0 0.0
  %1004 = vmatprep.subr.mxu0 0.0
  %1005 = vmatpush1.msra.mxu0 0.0
  %1006 = vmatprep.subr.mxu0 0.0
  %1007 = vmatpush1.msra.mxu0 0.0
  %1008 = vmatprep.subr.mxu0 0.0
  %1009 = vmatpush1.msra.mxu0 0.0
  %1010 = vmatprep.subr.mxu0 0.0
  %1011 = vmatpush1.msra.mxu0 0.0
  %1012 = vmatprep.subr.mxu0 0.0
  %1013 = vmatpush1.msra.mxu0 0.0
  %1014 = vmatprep.subr.mxu0 0.0
  %1015 = vmatpush1.msra.mxu0 0.0
  %1016 = vmatprep.subr.mxu0 0.0
  %1017 = vmatpush1.msra.mxu0 0.0
  %1018 = vmatprep.subr.mxu0 0.0
  %1019 = vmatpush1.msra.mxu0 0.0
  %1020 = vmatprep.subr.mxu0 0.0
  %1021 = vmatpush1.msra.mxu0 0.0
  %1022 = vmatprep.subr.mxu0 0.0
  %1023 = vmatpush1.msra.mxu0 0.0
  %1024 = vmatprep.subr.mxu0 0.0
  %1025 = vmatpush1.msra.mxu0 0.0
  %1026 = vmatprep.subr.mxu0 0.0
  %1027 = vmatpush1.msra.mxu0 0.0
  %1028 = vmatprep.mubr.f32.mxu0 0.0
  %1029 = vmatmul.mubr.f32.gmra.mrb[0].mxu0 %v962
  %v1030 = vpop.f32.mrb[0].mxu0
  %v1031 = vadd.f32 0.0, %v1030
  %v1032 = vpop.f32.mrb[0].mxu0
  %1033 = vdwg.mxu0
  %v1034 = vadd.f32 %v282, %v1031
  %v1035 = vtanh.pop %v1034
  %v1036 = vmul.f32 %v1035, 0.5
  %v1037 = vadd.f32 %v1036, 0.5
  %v1038 = vmul.f32 %v1037, %v952
  %1040 = vrot.lane.b32.xlu0 %v1035, 96
  %v1041 = vpop.permute.xlu0 %1040
  %v1043 = vmul.f32 %v1037, %v1041
  %1045 = vrot.lane.b32.xlu0 %v1043, 96
  %v1046 = vpop.permute.xlu0 %1045
  %v1048 = vadd.f32 %v1038, %v1046
  %v1049 = vtanh.pop %v1048
  %1051 = vrot.lane.b32.xlu0 %v1049, 96
  %v1052 = vpop.permute.xlu0 %1051
  %v1054 = vmul.f32 %v1037, %v1052
  %v1055 = vld [vmem:[%s7] sm:$0x1]
  %v1057 = vlaneseq
  %v1058 = vshrl.u32 %v1057, 7
  %v1059 = vsub.s32 0, %v1058
  %v1060 = vrot.slane %v1055, %v1059
  %1061 = vrot.lane.b32.xlu0 %v1060, 96
  %v1062 = vpop.permute.xlu0 %1061
  %v1064 = vmul.f32 %v1054, %v1062
  %1066 = vrot.lane.b32.xlu0 %v1064, 32
  %v1067 = vpop.permute.xlu0 %1066
  %v1069 = vsel %vm128, %v1067, 0.0
  %1070 = vadd.xlane.f32.xlu0 %v1069
  %v1071 = vpop.xlane.xlu0 %1070
  %v1072 = vadd.f32 %v1071, %v134
  %vm1073 = vcmask 7168
  %1074 = vst.msk [vmem:[%s10] sm:$0xff] %vm1073, %v1072
  // Predicated region
  $region42: #{tpu_custom_call.1} parent=0 // pred_check
    _
  $region43: #{tpu_custom_call.1} parent=0 // pred_check_branch
    %1076 = sbr.rel (0) target = $region45
  $region44: #{tpu_custom_call.1} parent=0 // pred_region
    _
  $region45: #{tpu_custom_call.1} parent=0 // pred_fallthru
    _
  // Predicated region
  $region46: #{tpu_custom_call.1} parent=0 // pred_check
    _
  $region47: #{tpu_custom_call.1} parent=0 // pred_check_branch
    %1078 = sbr.rel (0) target = $region49
  $region48: #{tpu_custom_call.1} parent=0 // pred_region
    _
  $region49: #{tpu_custom_call.1} parent=0 // pred_fallthru
    _

</llo_original>
